<compile_context>
chip_gen: v6e
topology: v6e:2x2x1
jax: 0.10.0
libtpu: 0.0.40
codegen_flags: <defaults>
</compile_context>

<pallas_src>
import jax
import jax.numpy as jnp
import numpy as np
from jax import lax
from jax.experimental import pallas as pl
from jax.experimental.pallas import tpu as pltpu


# ----------------------------- fused kernel ----------------------------------
def tabnet_kernel(x_ref, w_ref, b_ref, o_ref):
    # x_ref: (TB, Din)   batch tile
    # w_ref: (H, Din)    fc1 weight in native PyTorch nn.Linear layout
    # b_ref: (1, H)      fc1 bias
    # o_ref: (TB, H)     embedding tile (lane-dense: H is a multiple of 128)
    #
    # x @ W^T on the MXU: contract last dim of x with last dim of W.
    h = lax.dot_general(
        x_ref[...], w_ref[...],
        dimension_numbers=(((1,), (1,)), ((), ())),
        preferred_element_type=jnp.float32,
    )
    # Bias broadcast + ReLU ride the VPU in the same pass.
    o_ref[...] = jnp.maximum(h + b_ref[...], 0.0)


# ----------------------------- wrapper ----------------------------------------
def tabnet_forward(x, w1, b1, *, block_b=256):
    """Forward pass of TabNet: relu(fc1(x)).

    x : (B, Din) float32
    w1: (H, Din) float32   -- PyTorch nn.Linear weight layout (used as-is)
    b1: (H,)     float32
    """
    B, Din = x.shape
    H = w1.shape[0]

    # Sublane-aligned batch tile; pad odd batch sizes up to the tile.
    tb = min(block_b, max(8, ((B + 7) // 8) * 8))
    pad = (-B) % tb
    if pad:
        x = jnp.pad(x, ((0, pad), (0, 0)))
    Bp = x.shape[0]

    out = pl.pallas_call(
        tabnet_kernel,
        out_shape=jax.ShapeDtypeStruct((Bp, H), jnp.float32),
        grid=(Bp // tb,),
        in_specs=[
            pl.BlockSpec((tb, Din), lambda i: (i, 0)),   # batch tile of x
            pl.BlockSpec((H, Din), lambda i: (0, 0)),    # full fc1 weight
            pl.BlockSpec((1, H), lambda i: (0, 0)),      # fc1 bias
        ],
        out_specs=pl.BlockSpec((tb, H), lambda i: (i, 0)),
        compiler_params=pltpu.CompilerParams(
            dimension_semantics=("parallel",)),  # batch axis shards across v7x TCs
    )(x, w1, b1.reshape(1, H))

    return out[:B] if pad else out


# ------------------------- pure-JAX reference ---------------------------------
def reference(x, w1, b1):
    return jnp.maximum(x @ w1.T + b1.reshape(1, -1), 0.0)


if __name__ == "__main__":
    # Small, TPU-friendly shapes consistent with the module:
    # batch=128 (sublane-aligned), input_dim=64, hidden_dim=128 (lane-dense).
    B, INPUT_DIM, HIDDEN_DIM, OUTPUT_DIM = 128, 64, 128, 32

    key = jax.random.PRNGKey(0)
    kx, kw1, kb1, kw2, kb2 = jax.random.split(key, 5)

    x = jax.random.normal(kx, (B, INPUT_DIM), dtype=jnp.float32)

    # PyTorch nn.Linear default init: U(-1/sqrt(fan_in), 1/sqrt(fan_in)).
    bound1 = 1.0 / np.sqrt(INPUT_DIM)
    w1 = jax.random.uniform(kw1, (HIDDEN_DIM, INPUT_DIM), jnp.float32,
                            -bound1, bound1)
    b1 = jax.random.uniform(kb1, (HIDDEN_DIM,), jnp.float32, -bound1, bound1)

    # fc2 mirrors the module's __init__ but is unused in forward(); not
    # consumed by the kernel.
    bound2 = 1.0 / np.sqrt(HIDDEN_DIM)
    w2 = jax.random.uniform(kw2, (OUTPUT_DIM, HIDDEN_DIM), jnp.float32,
                            -bound2, bound2)
    b2 = jax.random.uniform(kb2, (OUTPUT_DIM,), jnp.float32, -bound2, bound2)

    out = tabnet_forward(x, w1, b1)
    out = jax.block_until_ready(out)

    ref = reference(x, w1, b1)
    assert out.shape == (B, HIDDEN_DIM)
    np.testing.assert_allclose(np.asarray(out), np.asarray(ref),
                               rtol=1e-5, atol=1e-5)
    print("KERNEL_OK")
</pallas_src>

<mosaic_0001>
module attributes {stable_mosaic.version = 11 : i64} {
  func.func @tabnet_kernel(%arg0: i32, %arg1: memref<128x64xf32, #tpu.memory_space<vmem>>, %arg2: memref<128x64xf32, #tpu.memory_space<vmem>>, %arg3: memref<1x128xf32, #tpu.memory_space<vmem>>, %arg4: memref<128x128xf32, #tpu.memory_space<vmem>>) attributes {dimension_semantics = [#tpu.dimension_semantics<parallel>], iteration_bounds = array<i64: 1>, scalar_prefetch = 0 : i64, scratch_operands = 0 : i64, tpu.core_type = #tpu.core_type<tc>, window_params = [{transform_indices = @transform_0, window_bounds = array<i64: 128, 64>}, {pipeline_mode = #tpu.pipeline_mode<synchronous>, transform_indices = @transform_1, window_bounds = array<i64: 128, 64>}, {pipeline_mode = #tpu.pipeline_mode<synchronous>, transform_indices = @transform_2, window_bounds = array<i64: 1, 128>}, {transform_indices = @transform_3, window_bounds = array<i64: 128, 128>}]} {
    %c0 = arith.constant 0 : index
    %c0_0 = arith.constant 0 : index
    %0 = vector.load %arg1[%c0, %c0_0] : memref<128x64xf32, #tpu.memory_space<vmem>>, vector<128x64xf32>
    %c0_1 = arith.constant 0 : index
    %c0_2 = arith.constant 0 : index
    %1 = vector.load %arg2[%c0_1, %c0_2] : memref<128x64xf32, #tpu.memory_space<vmem>>, vector<128x64xf32>
    %cst = arith.constant dense<0.000000e+00> : vector<128x128xf32>
    %2 = tpu.matmul %0, %1, %cst {dimension_numbers = #tpu.dot_dimension_numbers<[1], [1], [0], [0], [0, 0, 1, 0], [], []>} : vector<128x64xf32>, vector<128x64xf32>, vector<128x128xf32> -> vector<128x128xf32>
    %c0_3 = arith.constant 0 : index
    %c0_4 = arith.constant 0 : index
    %3 = vector.load %arg3[%c0_3, %c0_4] : memref<1x128xf32, #tpu.memory_space<vmem>>, vector<1x128xf32>
    %4 = vector.broadcast %3 : vector<1x128xf32> to vector<128x128xf32>
    %5 = arith.addf %2, %4 : vector<128x128xf32>
    %cst_5 = arith.constant 0.000000e+00 : f32
    %6 = vector.broadcast %cst_5 : f32 to vector<128x128xf32>
    %7 = arith.maximumf %5, %6 : vector<128x128xf32>
    %c0_6 = arith.constant 0 : index
    %c0_7 = arith.constant 0 : index
    %8 = vector.load %arg4[%c0_6, %c0_7] : memref<128x128xf32, #tpu.memory_space<vmem>>, vector<128x128xf32>
    tpu.vector_store %arg4[%c0_6, %c0_7], %7 {strides = array<i32>} : memref<128x128xf32, #tpu.memory_space<vmem>>, vector<128x128xf32>,
    return
  }
  func.func @transform_0(%arg0: i32) -> (i32, i32) {
    %c0_i32 = arith.constant 0 : i32
    %c0_i32_0 = arith.constant 0 : i32
    return %arg0, %c0_i32 : i32, i32
  }
  func.func @transform_1(%arg0: i32) -> (i32, i32) {
    %c0_i32 = arith.constant 0 : i32
    %c0_i32_0 = arith.constant 0 : i32
    %c0_i32_1 = arith.constant 0 : i32
    return %c0_i32, %c0_i32_0 : i32, i32
  }
  func.func @transform_2(%arg0: i32) -> (i32, i32) {
    %c0_i32 = arith.constant 0 : i32
    %c0_i32_0 = arith.constant 0 : i32
    %c0_i32_1 = arith.constant 0 : i32
    return %c0_i32, %c0_i32_0 : i32, i32
  }
  func.func @transform_3(%arg0: i32) -> (i32, i32) {
    %c0_i32 = arith.constant 0 : i32
    %c0_i32_0 = arith.constant 0 : i32
    return %arg0, %c0_i32 : i32, i32
  }
}

</mosaic_0001>

<llo_original>
// kernel: tpu_custom_call.1
$region0: #{tpu_custom_call.1}
  #allocation0 [shape = 'u32[]', space=smem, size = 0x4, offset = 0x4, fixed_abs, tag = 'smem constant byte address 0x4 - core index']
  #allocation1 [shape = 'u32[144,128]{1,0:T(1,128)}', space=vmem, size = 0x12000, scoped, tag = 'internal scratch']
  %s0 = inlined_call_operand.vmem [shape: f32[128,64], index: 0, kind: input, shape index: {}]
  %s1 = inlined_call_operand.vmem [shape: f32[128,64], index: 1, kind: input, shape index: {}]
  %s2 = inlined_call_operand.vmem [shape: f32[1,128], index: 2, kind: input, shape index: {}]
  %s3 = inlined_call_operand.hbm [shape: f32[128,128], index: 3, kind: output, shape index: {}]
  %s4 = sld [smem:[#allocation0]]
  $region22: #{tpu_custom_call.1} parent=0
    _
  %s6 = ssub.s32 1, %s4
  %s7 = scalar_select 0, %s6, %s4
  $region1: #{tpu_custom_call.1} parent=0
    #allocation2 [shape = 'u8[65536]{0}', space=vmem, size = 0x10000, scoped, tag = 'output window, operand 0, single buffered']
    #allocation3 [shape = 's32[1]{0}', space=sflag, size = 0x4, scoped, tag = 'scoped memory for tpu_custom_call.1']
    %8 = vsyncpa [#allocation3], 0
    // Predicated region
    $region2: #{tpu_custom_call.1} parent=1 // pred_check
      _
    $region3: #{tpu_custom_call.1} parent=1 // pred_check_branch
      %10 = sbr.rel (0) target = $region5
    $region4: #{tpu_custom_call.1} parent=1 // pred_region
      _
    $region5: #{tpu_custom_call.1} parent=1 // pred_fallthru
      _
    // Predicated region
    $region6: #{tpu_custom_call.1} parent=1 // pred_check
      _
    $region7: #{tpu_custom_call.1} parent=1 // pred_check_branch
      %12 = sbr.rel (0) target = $region9
    $region8: #{tpu_custom_call.1} parent=1 // pred_region
      _
    $region9: #{tpu_custom_call.1} parent=1 // pred_fallthru
      _
    // Predicated region
    $region10: #{tpu_custom_call.1} parent=1 // pred_check
      _
    $region11: #{tpu_custom_call.1} parent=1 // pred_check_branch
      %14 = sbr.rel (0) target = $region13
    $region12: #{tpu_custom_call.1} parent=1 // pred_region
      _
    $region13: #{tpu_custom_call.1} parent=1 // pred_fallthru
      _
    %v15 = vld [vmem:[%s0] sm:$0xff]
    %v16 = vld [vmem:[%s0 + $0x8] sm:$0xff]
    %v17 = vld [vmem:[%s0 + $0x10] sm:$0xff]
    %v18 = vld [vmem:[%s0 + $0x18] sm:$0xff]
    %v19 = vld [vmem:[%s0 + $0x20] sm:$0xff]
    %v20 = vld [vmem:[%s0 + $0x28] sm:$0xff]
    %v21 = vld [vmem:[%s0 + $0x30] sm:$0xff]
    %v22 = vld [vmem:[%s0 + $0x38] sm:$0xff]
    %v23 = vld [vmem:[%s0 + $0x40] sm:$0xff]
    %v24 = vld [vmem:[%s0 + $0x48] sm:$0xff]
    %v25 = vld [vmem:[%s0 + $0x50] sm:$0xff]
    %v26 = vld [vmem:[%s0 + $0x58] sm:$0xff]
    %v27 = vld [vmem:[%s0 + $0x60] sm:$0xff]
    %v28 = vld [vmem:[%s0 + $0x68] sm:$0xff]
    %v29 = vld [vmem:[%s0 + $0x70] sm:$0xff]
    %v30 = vld [vmem:[%s0 + $0x78] sm:$0xff]
    %v31 = vld [vmem:[%s1] sm:$0xff]
    %v32 = vld [vmem:[%s1 + $0x8] sm:$0xff]
    %v33 = vld [vmem:[%s1 + $0x10] sm:$0xff]
    %v34 = vld [vmem:[%s1 + $0x18] sm:$0xff]
    %v35 = vld [vmem:[%s1 + $0x20] sm:$0xff]
    %v36 = vld [vmem:[%s1 + $0x28] sm:$0xff]
    %v37 = vld [vmem:[%s1 + $0x30] sm:$0xff]
    %v38 = vld [vmem:[%s1 + $0x38] sm:$0xff]
    %v39 = vld [vmem:[%s1 + $0x40] sm:$0xff]
    %v40 = vld [vmem:[%s1 + $0x48] sm:$0xff]
    %v41 = vld [vmem:[%s1 + $0x50] sm:$0xff]
    %v42 = vld [vmem:[%s1 + $0x58] sm:$0xff]
    %v43 = vld [vmem:[%s1 + $0x60] sm:$0xff]
    %v44 = vld [vmem:[%s1 + $0x68] sm:$0xff]
    %v45 = vld [vmem:[%s1 + $0x70] sm:$0xff]
    %v46 = vld [vmem:[%s1 + $0x78] sm:$0xff]
    %v47 = vld [vmem:[%s2] sm:$0x1]
    %v49 = vlaneseq
    %v50 = vshrl.u32 %v49, 7
    %v51 = vsub.s32 0, %v50
    %v52 = vrot.slane %v47, %v51
    %vm54 = vcmask 523264
    %v56 = vsel %vm54, %v15, 0
    %v59 = vsel %vm54, %v16, 0
    %v62 = vsel %vm54, %v17, 0
    %v65 = vsel %vm54, %v18, 0
    %v68 = vsel %vm54, %v19, 0
    %v71 = vsel %vm54, %v20, 0
    %v74 = vsel %vm54, %v21, 0
    %v77 = vsel %vm54, %v22, 0
    %v80 = vsel %vm54, %v23, 0
    %v83 = vsel %vm54, %v24, 0
    %v86 = vsel %vm54, %v25, 0
    %v89 = vsel %vm54, %v26, 0
    %v92 = vsel %vm54, %v27, 0
    %v95 = vsel %vm54, %v28, 0
    %v98 = vsel %vm54, %v29, 0
    %v101 = vsel %vm54, %v30, 0
    %v104 = vsel %vm54, %v31, 0
    %v107 = vsel %vm54, %v32, 0
    %v110 = vsel %vm54, %v33, 0
    %v113 = vsel %vm54, %v34, 0
    %v116 = vsel %vm54, %v35, 0
    %v119 = vsel %vm54, %v36, 0
    %v122 = vsel %vm54, %v37, 0
    %v125 = vsel %vm54, %v38, 0
    %v128 = vsel %vm54, %v39, 0
    %v131 = vsel %vm54, %v40, 0
    %v134 = vsel %vm54, %v41, 0
    %v137 = vsel %vm54, %v42, 0
    %v140 = vsel %vm54, %v43, 0
    %v143 = vsel %vm54, %v44, 0
    %v146 = vsel %vm54, %v45, 0
    %v149 = vsel %vm54, %v46, 0
    %151 = vmatprep.subr.mxu0 0.0
    %152 = vmatpush1.xpose.msra.mxu0 %v149
    %153 = vmatprep.subr.mxu0 0.0
    %154 = vmatpush1.xpose.msra.mxu0 %v146
    %155 = vmatprep.subr.mxu0 0.0
    %156 = vmatpush1.xpose.msra.mxu0 %v143
    %157 = vmatprep.subr.mxu0 0.0
    %158 = vmatpush1.xpose.msra.mxu0 %v140
    %159 = vmatprep.subr.mxu0 0.0
    %160 = vmatpush1.xpose.msra.mxu0 %v137
    %161 = vmatprep.subr.mxu0 0.0
    %162 = vmatpush1.xpose.msra.mxu0 %v134
    %163 = vmatprep.subr.mxu0 0.0
    %164 = vmatpush1.xpose.msra.mxu0 %v131
    %165 = vmatprep.subr.mxu0 0.0
    %166 = vmatpush1.xpose.msra.mxu0 %v128
    %167 = vmatprep.subr.mxu0 0.0
    %168 = vmatpush1.xpose.msra.mxu0 %v125
    %169 = vmatprep.subr.mxu0 0.0
    %170 = vmatpush1.xpose.msra.mxu0 %v122
    %171 = vmatprep.subr.mxu0 0.0
    %172 = vmatpush1.xpose.msra.mxu0 %v119
    %173 = vmatprep.subr.mxu0 0.0
    %174 = vmatpush1.xpose.msra.mxu0 %v116
    %175 = vmatprep.subr.mxu0 0.0
    %176 = vmatpush1.xpose.msra.mxu0 %v113
    %177 = vmatprep.subr.mxu0 0.0
    %178 = vmatpush1.xpose.msra.mxu0 %v110
    %179 = vmatprep.subr.mxu0 0.0
    %180 = vmatpush1.xpose.msra.mxu0 %v107
    %181 = vmatprep.subr.mxu0 0.0
    %182 = vmatpush1.xpose.msra.mxu0 %v104
    %183 = vmatprep.subr.mxu0 0.0
    %184 = vmatpush2.xpose.msra.mxu0 0.0
    %185 = vmatprep.subr.mxu0 0.0
    %186 = vmatpush2.xpose.msra.mxu0 0.0
    %187 = vmatprep.subr.mxu0 0.0
    %188 = vmatpush2.xpose.msra.mxu0 0.0
    %189 = vmatprep.subr.mxu0 0.0
    %190 = vmatpush2.xpose.msra.mxu0 0.0
    %191 = vmatprep.subr.mxu0 0.0
    %192 = vmatpush2.xpose.msra.mxu0 0.0
    %193 = vmatprep.subr.mxu0 0.0
    %194 = vmatpush2.xpose.msra.mxu0 0.0
    %195 = vmatprep.subr.mxu0 0.0
    %196 = vmatpush2.xpose.msra.mxu0 0.0
    %197 = vmatprep.subr.mxu0 0.0
    %198 = vmatpush2.xpose.msra.mxu0 0.0
    %199 = vmatprep.subr.mxu0 0.0
    %200 = vmatpush2.xpose.msra.mxu0 0.0
    %201 = vmatprep.subr.mxu0 0.0
    %202 = vmatpush2.xpose.msra.mxu0 0.0
    %203 = vmatprep.subr.mxu0 0.0
    %204 = vmatpush2.xpose.msra.mxu0 0.0
    %205 = vmatprep.subr.mxu0 0.0
    %206 = vmatpush2.xpose.msra.mxu0 0.0
    %207 = vmatprep.subr.mxu0 0.0
    %208 = vmatpush2.xpose.msra.mxu0 0.0
    %209 = vmatprep.subr.mxu0 0.0
    %210 = vmatpush2.xpose.msra.mxu0 0.0
    %211 = vmatprep.subr.mxu0 0.0
    %212 = vmatpush2.xpose.msra.mxu0 0.0
    %213 = vmatprep.subr.mxu0 0.0
    %214 = vmatpush2.xpose.msra.mxu0 0.0
    %215 = vmatprep.mubr.f32.mxu0 0.0
    %216 = vmatmul.mubr.f32.gmra.mxu0 %v56
    %v217 = vpop.f32.mrf.mxu0
    %v218 = vadd.f32 %v52, %v217
    %v219 = vpop.f32.mrf.mxu0
    %220 = vmatprep.mubr.f32.mxu0 0.0
    %221 = vmatmul.mubr.f32.gmra.mxu0 %v59
    %v222 = vpop.f32.mrf.mxu0
    %v223 = vadd.f32 %v52, %v222
    %v224 = vpop.f32.mrf.mxu0
    %225 = vmatprep.mubr.f32.mxu0 0.0
    %226 = vmatmul.mubr.f32.gmra.mxu0 %v62
    %v227 = vpop.f32.mrf.mxu0
    %v228 = vadd.f32 %v52, %v227
    %v229 = vpop.f32.mrf.mxu0
    %230 = vmatprep.mubr.f32.mxu0 0.0
    %231 = vmatmul.mubr.f32.gmra.mxu0 %v65
    %v232 = vpop.f32.mrf.mxu0
    %v233 = vadd.f32 %v52, %v232
    %v234 = vpop.f32.mrf.mxu0
    %235 = vmatprep.mubr.f32.mxu0 0.0
    %236 = vmatmul.mubr.f32.gmra.mxu0 %v68
    %v237 = vpop.f32.mrf.mxu0
    %v238 = vadd.f32 %v52, %v237
    %v239 = vpop.f32.mrf.mxu0
    %240 = vmatprep.mubr.f32.mxu0 0.0
    %241 = vmatmul.mubr.f32.gmra.mxu0 %v71
    %v242 = vpop.f32.mrf.mxu0
    %v243 = vadd.f32 %v52, %v242
    %v244 = vpop.f32.mrf.mxu0
    %245 = vmatprep.mubr.f32.mxu0 0.0
    %246 = vmatmul.mubr.f32.gmra.mxu0 %v74
    %v247 = vpop.f32.mrf.mxu0
    %v248 = vadd.f32 %v52, %v247
    %v249 = vpop.f32.mrf.mxu0
    %250 = vmatprep.mubr.f32.mxu0 0.0
    %251 = vmatmul.mubr.f32.gmra.mxu0 %v77
    %v252 = vpop.f32.mrf.mxu0
    %v253 = vadd.f32 %v52, %v252
    %v254 = vpop.f32.mrf.mxu0
    %255 = vmatprep.mubr.f32.mxu0 0.0
    %256 = vmatmul.mubr.f32.gmra.mxu0 %v80
    %v257 = vpop.f32.mrf.mxu0
    %v258 = vadd.f32 %v52, %v257
    %v259 = vpop.f32.mrf.mxu0
    %260 = vmatprep.mubr.f32.mxu0 0.0
    %261 = vmatmul.mubr.f32.gmra.mxu0 %v83
    %v262 = vpop.f32.mrf.mxu0
    %v263 = vadd.f32 %v52, %v262
    %v264 = vpop.f32.mrf.mxu0
    %265 = vmatprep.mubr.f32.mxu0 0.0
    %266 = vmatmul.mubr.f32.gmra.mxu0 %v86
    %v267 = vpop.f32.mrf.mxu0
    %v268 = vadd.f32 %v52, %v267
    %v269 = vpop.f32.mrf.mxu0
    %270 = vmatprep.mubr.f32.mxu0 0.0
    %271 = vmatmul.mubr.f32.gmra.mxu0 %v89
    %v272 = vpop.f32.mrf.mxu0
    %v273 = vadd.f32 %v52, %v272
    %v274 = vpop.f32.mrf.mxu0
    %275 = vmatprep.mubr.f32.mxu0 0.0
    %276 = vmatmul.mubr.f32.gmra.mxu0 %v92
    %v277 = vpop.f32.mrf.mxu0
    %v278 = vadd.f32 %v52, %v277
    %v279 = vpop.f32.mrf.mxu0
    %280 = vmatprep.mubr.f32.mxu0 0.0
    %281 = vmatmul.mubr.f32.gmra.mxu0 %v95
    %v282 = vpop.f32.mrf.mxu0
    %v283 = vadd.f32 %v52, %v282
    %v284 = vpop.f32.mrf.mxu0
    %285 = vmatprep.mubr.f32.mxu0 0.0
    %286 = vmatmul.mubr.f32.gmra.mxu0 %v98
    %v287 = vpop.f32.mrf.mxu0
    %v288 = vadd.f32 %v52, %v287
    %v289 = vpop.f32.mrf.mxu0
    %290 = vmatprep.mubr.f32.mxu0 0.0
    %291 = vmatmul.mubr.f32.gmra.mxu0 %v101
    %v292 = vpop.f32.mrf.mxu0
    %v293 = vadd.f32 %v52, %v292
    %v294 = vpop.f32.mrf.mxu0
    %295 = vdwg.mxu0
    %v296 = vmax.f32 %v218, 0.0
    %v297 = vmax.f32 %v223, 0.0
    %v298 = vmax.f32 %v228, 0.0
    %v299 = vmax.f32 %v233, 0.0
    %v300 = vmax.f32 %v238, 0.0
    %v301 = vmax.f32 %v243, 0.0
    %v302 = vmax.f32 %v248, 0.0
    %v303 = vmax.f32 %v253, 0.0
    %v304 = vmax.f32 %v258, 0.0
    %v305 = vmax.f32 %v263, 0.0
    %v306 = vmax.f32 %v268, 0.0
    %v307 = vmax.f32 %v273, 0.0
    %v308 = vmax.f32 %v278, 0.0
    %v309 = vmax.f32 %v283, 0.0
    %v310 = vmax.f32 %v288, 0.0
    %v311 = vmax.f32 %v293, 0.0
    %312 = vst [vmem:[#allocation2] sm:$0xff] %v296
    %313 = vst [vmem:[#allocation2 + $0x8] sm:$0xff] %v297
    %314 = vst [vmem:[#allocation2 + $0x10] sm:$0xff] %v298
    %315 = vst [vmem:[#allocation2 + $0x18] sm:$0xff] %v299
    %316 = vst [vmem:[#allocation2 + $0x20] sm:$0xff] %v300
    %317 = vst [vmem:[#allocation2 + $0x28] sm:$0xff] %v301
    %318 = vst [vmem:[#allocation2 + $0x30] sm:$0xff] %v302
    %319 = vst [vmem:[#allocation2 + $0x38] sm:$0xff] %v303
    %320 = vst [vmem:[#allocation2 + $0x40] sm:$0xff] %v304
    %321 = vst [vmem:[#allocation2 + $0x48] sm:$0xff] %v305
    %322 = vst [vmem:[#allocation2 + $0x50] sm:$0xff] %v306
    %323 = vst [vmem:[#allocation2 + $0x58] sm:$0xff] %v307
    %324 = vst [vmem:[#allocation2 + $0x60] sm:$0xff] %v308
    %325 = vst [vmem:[#allocation2 + $0x68] sm:$0xff] %v309
    %326 = vst [vmem:[#allocation2 + $0x70] sm:$0xff] %v310
    %327 = vst [vmem:[#allocation2 + $0x78] sm:$0xff] %v311
    // Predicated region
    $region14: #{tpu_custom_call.1} parent=1 // pred_check
      _
    $region15: #{tpu_custom_call.1} parent=1 // pred_check_branch
      %329 = sbr.rel (0) target = $region17
    $region16: #{tpu_custom_call.1} parent=1 // pred_region
      %s331 = ssub.s32 2048, 2048
      %332 = vsyncadd [#allocation3], %s331
      %s333 = sshll.u32 [#allocation2], 4
      %s334 = int_to_ptr.vmem [resolvable:$true] %s333
      %339 = dma.vmem_to_hbm [thread:$0]  %s334, 2048, %s3, [#allocation3], 128, 128, 8
    $region17: #{tpu_custom_call.1} parent=1 // pred_fallthru
      _
    // Predicated region
    $region18: #{tpu_custom_call.1} parent=1 // pred_check
      _
    $region19: #{tpu_custom_call.1} parent=1 // pred_check_branch
      %341 = sbr.rel (0) target = $region21
    $region20: #{tpu_custom_call.1} parent=1 // pred_region
      %342 = dma.done [#allocation3], 2048
    $region21: #{tpu_custom_call.1} parent=1 // pred_fallthru
      _
    %343 = vsyncpa [#allocation3], 1

</llo_original>
